<compile_context>
chip_gen: v5e
topology: v5e:2x2
jax: 0.10.0
libtpu: 0.0.40
codegen_flags: <defaults>
</compile_context>

<pallas_src>
import functools

import jax
import jax.numpy as jnp
from jax.experimental import pallas as pl
from jax.experimental.pallas import tpu as pltpu


def _my_add_kernel(a_ref, b_ref, o_ref):
    # out = 2*a + b ; the weakly-typed `* 2` preserves the input dtype
    # (matching the ONNX Mul-by-2 + Add semantics).
    o_ref[...] = a_ref[...] * 2 + b_ref[...]


_LANE = 128
_SMALL_BYTES = 512 * 1024            # grid-less fast-path threshold (256-512 KiB)
_MIN_BLOCK_BYTES = 2 * 1024 * 1024   # never stream with blocks smaller than this
_MAX_BLOCK_BYTES = 8 * 1024 * 1024   # ~8 MiB blocks amortize the ~0.35us/step cost
_MIN_TILE_ROWS = 512                 # stay off the tiny-tile overhead cliff
_MIN_PIPELINE_STEPS = 4              # enough grid steps for DMA/compute overlap


@functools.lru_cache(maxsize=None)
def _tpu_config():
    """(block_bytes, vmem_limit_bytes, is_v7x) derived from the local TPU."""
    vmem_cap = 64 * 1024 * 1024                      # conservative default
    try:
        vmem_cap = int(pltpu.get_tpu_info().vmem_capacity_bytes)
    except Exception:
        pass
    is_v7x = False
    try:
        is_v7x = "7" in jax.local_devices()[0].device_kind.lower()
    except Exception:
        pass
    # 2 inputs + 1 output, double-buffered = 6 live blocks; keep headroom.
    # 128 MiB VMEM (v5e/v6e) -> 8 MiB blocks / 80 MiB limit;
    #  64 MiB VMEM (v7x)     -> 4 MiB blocks / 40 MiB limit.
    block_bytes = min(_MAX_BLOCK_BYTES, max(_MIN_BLOCK_BYTES, vmem_cap // 16))
    vmem_limit = min((vmem_cap * 3) // 4, 10 * block_bytes)
    return block_bytes, vmem_limit, is_v7x


def _round_up(x, m):
    return -(-x // m) * m


def _pick_tile_rows(rows, lane, itemsize, block_bytes):
    """Dtype-aware row count: target ~block_bytes per block, >=4 grid steps."""
    row_bytes = max(1, lane * itemsize)
    max_rows = max(8, (block_bytes // row_bytes) // 8 * 8)
    want = max(_MIN_TILE_ROWS, _round_up(pl.cdiv(rows, _MIN_PIPELINE_STEPS), 8))
    want = min(want, _round_up(rows, 8))      # never over-allocate vs the array
    return max(8, min(max_rows, want))


def _gridless_call(a2d, b2d):
    return pl.pallas_call(
        _my_add_kernel,
        out_shape=jax.ShapeDtypeStruct(a2d.shape, a2d.dtype),
    )(a2d, b2d)


def _stream_call(a2d, b2d, tile_rows, dim_semantics, vmem_limit):
    rows, lane = a2d.shape
    spec = pl.BlockSpec((tile_rows, lane), lambda i: (i, 0))
    return pl.pallas_call(
        _my_add_kernel,
        out_shape=jax.ShapeDtypeStruct((rows, lane), a2d.dtype),
        grid_spec=pltpu.PrefetchScalarGridSpec(
            num_scalar_prefetch=0,
            grid=(pl.cdiv(rows, tile_rows),),     # ragged last block is masked
            in_specs=[spec, spec],
            out_specs=spec,
        ),
        compiler_params=pltpu.CompilerParams(
            dimension_semantics=dim_semantics,
            vmem_limit_bytes=vmem_limit,
        ),
    )(a2d, b2d)


def _stream(a2d, b2d, tile_rows):
    _, vmem_limit, is_v7x = _tpu_config()
    if is_v7x:
        # Split the row grid across both v7x TensorCores; fall back to plain
        # PARALLEL if this Mosaic build rejects CORE_PARALLEL here.
        try:
            return _stream_call(a2d, b2d, tile_rows,
                                (pltpu.CORE_PARALLEL,), vmem_limit)
        except Exception:
            pass
    return _stream_call(a2d, b2d, tile_rows, (pltpu.PARALLEL,), vmem_limit)


def my_add(a: jax.Array, b: jax.Array) -> jax.Array:
    """Pallas TPU implementation of MyAdd.forward(a, b) == 2*a + b."""
    assert a.shape == b.shape, "MyAdd expects same-shaped inputs"
    assert a.dtype == b.dtype, "MyAdd expects same-dtype inputs"
    orig_shape = a.shape
    total = int(a.size)
    if total == 0:
        return a * 2 + b

    itemsize = jnp.dtype(a.dtype).itemsize
    total_bytes = total * itemsize
    block_bytes, _, _ = _tpu_config()

    # ---- Fast path: small tensors -> one grid-less block (latency bound).
    if total_bytes <= _SMALL_BYTES:
        if total % _LANE == 0:
            shape2d = (total // _LANE, _LANE)     # lane-dense, unmasked stores
        else:
            shape2d = (1, total)
        out = _gridless_call(a.reshape(shape2d), b.reshape(shape2d))
        return out.reshape(orig_shape)

    # ---- Streaming path A: 128-divisible -> free reshape to (rows, 128) slab.
    if total % _LANE == 0:
        rows = total // _LANE
        tile_rows = _pick_tile_rows(rows, _LANE, itemsize, block_bytes)
        out = _stream(a.reshape(rows, _LANE), b.reshape(rows, _LANE), tile_rows)
        return out.reshape(orig_shape)

    # ---- Streaming path B: not 128-divisible.  No pad/slice HBM copies:
    # collapse (free) to (rows, last_dim) and tile rows; a block whose lane
    # extent equals the full last dim is always a legal TPU block.
    lane = int(orig_shape[-1])
    rows = total // lane
    row_bytes = lane * itemsize
    if rows >= 32 and 8 * row_bytes <= block_bytes:
        tile_rows = _pick_tile_rows(rows, lane, itemsize, block_bytes)
        out = _stream(a.reshape(rows, lane), b.reshape(rows, lane), tile_rows)
        return out.reshape(orig_shape)
    if total_bytes <= 2 * block_bytes:
        out = _gridless_call(a.reshape(rows, lane), b.reshape(rows, lane))
        return out.reshape(orig_shape)

    # ---- Rare fallback (pathological: huge non-128-divisible last dim with
    # too few rows to tile).  Pad to a lane multiple; costs extra HBM copies
    # but is only reachable for shapes the paths above cannot tile.
    pad = (-total) % _LANE
    a_flat = jnp.pad(a.reshape(-1), (0, pad))
    b_flat = jnp.pad(b.reshape(-1), (0, pad))
    rows_p = (total + pad) // _LANE
    tile_rows = _pick_tile_rows(rows_p, _LANE, itemsize, block_bytes)
    out = _stream(a_flat.reshape(rows_p, _LANE), b_flat.reshape(rows_p, _LANE),
                  tile_rows)
    return out.reshape(-1)[:total].reshape(orig_shape)


if __name__ == "__main__":
    key = jax.random.PRNGKey(0)
    ka, kb, kc, kd, ke, kf = jax.random.split(key, 6)

    # Primary: small NCHW inputs (grid-less fast path, lane-dense (16,128)).
    a = jax.random.normal(ka, (2, 4, 16, 16), dtype=jnp.float32)
    b = jax.random.normal(kb, (2, 4, 16, 16), dtype=jnp.float32)
    out = jax.block_until_ready(my_add(a, b))
    assert out.shape == a.shape and out.dtype == a.dtype
    assert jnp.allclose(out, 2.0 * a + b, atol=1e-6), "small-path mismatch"

    # Streaming path A: 128-divisible medium tensor (>= 4 pipelined grid steps).
    a2 = jax.random.normal(kc, (2, 8, 256, 260), dtype=jnp.float32)
    b2 = jax.random.normal(kd, (2, 8, 256, 260), dtype=jnp.float32)
    out2 = jax.block_until_ready(my_add(a2, b2))
    assert out2.shape == a2.shape
    assert jnp.allclose(out2, 2.0 * a2 + b2, atol=1e-6), "aligned-stream mismatch"

    # Streaming path B: non-128-divisible total -> no pad/slice, row tiling with
    # the full last dim as the lane extent, ragged last block.
    a3 = jax.random.normal(ke, (6, 301, 77), dtype=jnp.float32)
    b3 = jax.random.normal(kf, (6, 301, 77), dtype=jnp.float32)
    out3 = jax.block_until_ready(my_add(a3, b3))
    assert out3.shape == a3.shape
    assert jnp.allclose(out3, 2.0 * a3 + b3, atol=1e-6), "unaligned-stream mismatch"

    print("KERNEL_OK")
</pallas_src>

<mosaic_0001>
module attributes {stable_mosaic.version = 11 : i64} {
  func.func @_my_add_kernel(%arg0: memref<16x128xf32, #tpu.memory_space<vmem>>, %arg1: memref<16x128xf32, #tpu.memory_space<vmem>>, %arg2: memref<16x128xf32, #tpu.memory_space<vmem>>) attributes {dimension_semantics = [], scalar_prefetch = 0 : i64, scratch_operands = 0 : i64, tpu.core_type = #tpu.core_type<tc>} {
    %c0 = arith.constant 0 : index
    %c0_0 = arith.constant 0 : index
    %0 = vector.load %arg0[%c0, %c0_0] : memref<16x128xf32, #tpu.memory_space<vmem>>, vector<16x128xf32>
    %cst = arith.constant 2.000000e+00 : f32
    %1 = vector.broadcast %cst : f32 to vector<16x128xf32>
    %2 = arith.mulf %0, %1 : vector<16x128xf32>
    %c0_1 = arith.constant 0 : index
    %c0_2 = arith.constant 0 : index
    %3 = vector.load %arg1[%c0_1, %c0_2] : memref<16x128xf32, #tpu.memory_space<vmem>>, vector<16x128xf32>
    %4 = arith.addf %2, %3 : vector<16x128xf32>
    %c0_3 = arith.constant 0 : index
    %c0_4 = arith.constant 0 : index
    %5 = vector.load %arg2[%c0_3, %c0_4] : memref<16x128xf32, #tpu.memory_space<vmem>>, vector<16x128xf32>
    tpu.vector_store %arg2[%c0_3, %c0_4], %4 {strides = array<i32>} : memref<16x128xf32, #tpu.memory_space<vmem>>, vector<16x128xf32>,
    return
  }
}

</mosaic_0001>

<llo_original>
// kernel: tpu_custom_call.1
$region0: #{tpu_custom_call.1}
  #allocation0 [shape = 'u32[]', space=smem, size = 0x4, offset = 0x4, fixed_abs, tag = 'smem constant byte address 0x4 - core index']
  #allocation1 [shape = 'u32[72,128]{1,0:T(1,128)}', space=vmem, size = 0x9000, scoped, tag = 'internal scratch']
  %s0 = inlined_call_operand.hbm [shape: f32[16,128], index: 0, kind: input, shape index: {}]
  %s1 = inlined_call_operand.hbm [shape: f32[16,128], index: 1, kind: input, shape index: {}]
  %s2 = inlined_call_operand.hbm [shape: f32[16,128], index: 2, kind: output, shape index: {}]
  %s3 = sld [smem:[#allocation0]]
  $region26: #{tpu_custom_call.1} parent=0
    _
  %s5 = ssub.s32 1, %s3
  %s6 = scalar_select 0, %s5, %s3
  $region1: #{tpu_custom_call.1} parent=0
    #allocation2 [shape = 'u8[8192]{0}', space=vmem, size = 0x2000, scoped, tag = 'input window, operand 0, single buffered']
    #allocation3 [shape = 's32[1]{0}', space=sflag, size = 0x4, scoped, tag = 'scoped memory for tpu_custom_call.1']
    #allocation4 [shape = 's32[1]{0}', space=sflag, size = 0x4, scoped, tag = 'scoped memory for tpu_custom_call.1']
    #allocation5 [shape = 'u8[8192]{0}', space=vmem, size = 0x2000, scoped, tag = 'input window, operand 1, single buffered']
    #allocation6 [shape = 's32[1]{0}', space=sflag, size = 0x4, scoped, tag = 'scoped memory for tpu_custom_call.1']
    #allocation7 [shape = 'u8[8192]{0}', space=vmem, size = 0x2000, scoped, tag = 'output window, operand 0, single buffered']
    %7 = vsyncpa [#allocation3], 0
    %8 = vsyncpa [#allocation6], 0
    %9 = vsyncpa [#allocation4], 0
    // Predicated region
    $region2: #{tpu_custom_call.1} parent=1 // pred_check
      _
    $region3: #{tpu_custom_call.1} parent=1 // pred_check_branch
      %11 = sbr.rel (0) target = $region5
    $region4: #{tpu_custom_call.1} parent=1 // pred_region
      %13 = vsyncadd [#allocation3], 0
      %s14 = sshll.u32 %s0, 4
      %s15 = int_to_ptr.hbm [resolvable:$true] %s14
      %s16 = sshll.u32 [#allocation2], 4
      %s17 = int_to_ptr.vmem [resolvable:$true] %s16
      %22 = dma.hbm_to_vmem [thread:$0]  %s15, 256, %s17, [#allocation3], 128, 128, 8
    $region5: #{tpu_custom_call.1} parent=1 // pred_fallthru
      _
    // Predicated region
    $region6: #{tpu_custom_call.1} parent=1 // pred_check
      _
    $region7: #{tpu_custom_call.1} parent=1 // pred_check_branch
      %24 = sbr.rel (0) target = $region9
    $region8: #{tpu_custom_call.1} parent=1 // pred_region
      %26 = vsyncadd [#allocation6], 0
      %s27 = sshll.u32 %s1, 4
      %s28 = int_to_ptr.hbm [resolvable:$true] %s27
      %s29 = sshll.u32 [#allocation5], 4
      %s30 = int_to_ptr.vmem [resolvable:$true] %s29
      %35 = dma.hbm_to_vmem [thread:$0]  %s28, 256, %s30, [#allocation6], 128, 128, 8
    $region9: #{tpu_custom_call.1} parent=1 // pred_fallthru
      _
    // Predicated region
    $region10: #{tpu_custom_call.1} parent=1 // pred_check
      _
    $region11: #{tpu_custom_call.1} parent=1 // pred_check_branch
      %37 = sbr.rel (0) target = $region13
    $region12: #{tpu_custom_call.1} parent=1 // pred_region
      %39 = dma.done [#allocation3], 256
    $region13: #{tpu_custom_call.1} parent=1 // pred_fallthru
      _
    // Predicated region
    $region14: #{tpu_custom_call.1} parent=1 // pred_check
      _
    $region15: #{tpu_custom_call.1} parent=1 // pred_check_branch
      %41 = sbr.rel (0) target = $region17
    $region16: #{tpu_custom_call.1} parent=1 // pred_region
      %43 = dma.done [#allocation6], 256
    $region17: #{tpu_custom_call.1} parent=1 // pred_fallthru
      _
    %v44 = vld [vmem:[#allocation2] sm:$0xff]
    %v45 = vld [vmem:[#allocation2 + $0x8] sm:$0xff]
    %v46 = vmul.f32 %v44, 2.0
    %v47 = vmul.f32 %v45, 2.0
    %v48 = vld [vmem:[#allocation5] sm:$0xff]
    %v49 = vld [vmem:[#allocation5 + $0x8] sm:$0xff]
    %v50 = vadd.f32 %v46, %v48
    %v51 = vadd.f32 %v47, %v49
    %52 = vst [vmem:[#allocation7] sm:$0xff] %v50
    %53 = vst [vmem:[#allocation7 + $0x8] sm:$0xff] %v51
    // Predicated region
    $region18: #{tpu_custom_call.1} parent=1 // pred_check
      _
    $region19: #{tpu_custom_call.1} parent=1 // pred_check_branch
      %55 = sbr.rel (0) target = $region21
    $region20: #{tpu_custom_call.1} parent=1 // pred_region
      %57 = vsyncadd [#allocation4], 0
      %s58 = sshll.u32 [#allocation7], 4
      %s59 = int_to_ptr.vmem [resolvable:$true] %s58
      %s60 = sshll.u32 %s2, 4
      %s61 = int_to_ptr.hbm [resolvable:$true] %s60
      %66 = dma.vmem_to_hbm [thread:$0]  %s59, 256, %s61, [#allocation4], 128, 128, 8
    $region21: #{tpu_custom_call.1} parent=1 // pred_fallthru
      _
    // Predicated region
    $region22: #{tpu_custom_call.1} parent=1 // pred_check
      _
    $region23: #{tpu_custom_call.1} parent=1 // pred_check_branch
      %68 = sbr.rel (0) target = $region25
    $region24: #{tpu_custom_call.1} parent=1 // pred_region
      %70 = dma.done [#allocation4], 256
    $region25: #{tpu_custom_call.1} parent=1 // pred_fallthru
      _
    %71 = vsyncpa [#allocation3], 1
    %72 = vsyncpa [#allocation6], 1
    %73 = vsyncpa [#allocation4], 1

</llo_original>
